<compile_context>
chip_gen: v7x
topology: tpu7x:2x2x1
jax: 0.10.0
libtpu: 0.0.40
codegen_flags: <defaults>
</compile_context>

<pallas_src>
import functools
import math

import jax
import jax.numpy as jnp
from jax import lax
from jax.experimental import pallas as pl
from jax.experimental.pallas import tpu as pltpu

P_REL = 4096  # same constant as labml RelativeMultiHeadAttention (self.P = 2**12)


# ------------------------------ block-size helpers ---------------------------

def _row_block(n, pref=256):
    if n <= pref:
        return n
    b = (pref // 8) * 8
    while b >= 8:
        if n % b == 0:
            return b
        b -= 8
    return n


def _col_block(n, pref=512):
    if n <= pref:
        return n
    b = (pref // 128) * 128
    while b >= 128:
        if n % b == 0:
            return b
        b -= 128
    return n


# ----------------------------- Pallas kernels ------------------------------

def _ln_matmul_kernel(*refs, num_out, has_bias, relu):
    """Fused LayerNorm -> (one or more) matmuls (+bias) (+ReLU)."""
    x_ref, g_ref, b_ref = refs[0], refs[1], refs[2]
    w_refs = refs[3:3 + num_out]
    if has_bias:
        wb_refs = refs[3 + num_out:3 + 2 * num_out]
        o_refs = refs[3 + 2 * num_out:]
    else:
        wb_refs = (None,) * num_out
        o_refs = refs[3 + num_out:]

    x = x_ref[...]                                      # [rows, D_in]
    mu = jnp.mean(x, axis=-1, keepdims=True)
    xc = x - mu
    var = jnp.mean(xc * xc, axis=-1, keepdims=True)     # biased variance (PyTorch LN)
    xn = (xc * lax.rsqrt(var + 1e-5)) * g_ref[...] + b_ref[...]

    for w_ref, wb_ref, o_ref in zip(w_refs, wb_refs, o_refs):
        y = jnp.dot(xn, w_ref[...], preferred_element_type=jnp.float32)
        if wb_ref is not None:
            y = y + wb_ref[...]
        if relu:
            y = jnp.maximum(y, 0.0)
        o_ref[...] = y.astype(o_ref.dtype)


def _matmul_residual_kernel(x_ref, w_ref, b_ref, res_ref, o_ref):
    """y = x @ W + b + residual (fused epilogue)."""
    y = jnp.dot(x_ref[...], w_ref[...], preferred_element_type=jnp.float32)
    o_ref[...] = (y + b_ref[...] + res_ref[...]).astype(o_ref.dtype)


def _rel_attn_kernel(q_ref, k_ref, v_ref, u_ref, pe_ref, pb_ref, mask_ref, o_ref,
                     *, heads, dk, scale):
    """Relative multi-head attention for one batch element, all heads in-kernel.

    q_ref: [1, S, D]   k_ref/v_ref: [1, T, D]
    u_ref: [H, dk]     pe_ref: [H, T+S, dk]   pb_ref: [H, T+S]
    mask_ref: [1, S, T] (1.0 = visible)       o_ref: [1, S, D]
    """
    q = q_ref[0]                 # [S, D]
    k = k_ref[0]                 # [T, D]
    v = v_ref[0]                 # [T, D]
    mask = mask_ref[0]           # [S, T]
    S = q.shape[0]
    T = k.shape[0]
    P = pe_ref.shape[1]          # T + S

    contract = (((1,), (1,)), ((), ()))   # contract dk of both operands (no k.T copy)
    outs = []
    for h in range(heads):
        lo = h * dk
        hi = lo + dk
        q_h = q[:, lo:hi]                        # [S, dk]
        k_h = k[:, lo:hi]                        # [T, dk]
        v_h = v[:, lo:hi]                        # [T, dk]
        u_h = u_ref[h:h + 1, :]                  # [1, dk]

        # "ac" term: (q + query_pos_bias) @ k^T  -> MXU
        ac = lax.dot_general(q_h + u_h, k_h, contract,
                             preferred_element_type=jnp.float32)          # [S, T]

        # "bd" term: q @ pos_emb^T on un-gathered embeddings -> MXU, then shift.
        bd_full = lax.dot_general(q_h, pe_ref[h], contract,
                                  preferred_element_type=jnp.float32)     # [S, P]
        bd_full = bd_full + pb_ref[h:h + 1, :]                            # + key_pos_bias

        # Relative shift (labml shift_right folded): bd[i, j] = bd_full[i, S + j - i].
        # Implemented as one uniform left-rotation by S followed by a per-row
        # right-rotation by i, decomposed into log2(S) conditional static rotations.
        xsk = jnp.concatenate([bd_full[:, S:], bd_full[:, :S]], axis=1)   # rot-left S
        row = lax.broadcasted_iota(jnp.int32, (S, P), 0)
        amt = 1
        while amt < S:
            rolled = jnp.concatenate([xsk[:, P - amt:], xsk[:, :P - amt]], axis=1)
            xsk = jnp.where((row & amt) != 0, rolled, xsk)
            amt *= 2
        bd = xsk[:, :T]                                                   # [S, T]

        scores = (ac + bd) * scale
        scores = jnp.where(mask > 0.0, scores, -1e30)   # finite mask value (no inf-inf)

        m = jnp.max(scores, axis=-1, keepdims=True)
        p = jnp.exp(scores - m)
        denom = jnp.sum(p, axis=-1, keepdims=True)
        attn = p * pl.reciprocal(denom, approx=True)                       # EUP divide
        outs.append(jnp.dot(attn, v_h, preferred_element_type=jnp.float32))  # [S, dk]

    # lane-dense [S, D] store (all heads concatenated along the feature axis)
    o_ref[0] = jnp.concatenate(outs, axis=1).astype(o_ref.dtype)


# ----------------------------- kernel wrappers ------------------------------

def _ln_matmul(x2d, g, b, weights, biases=None, relu=False, out_dtype=None):
    """Fused LN + matmul(s).  Tiled over rows and output columns."""
    n, d_in = x2d.shape
    d_out = weights[0].shape[1]
    num_out = len(weights)
    has_bias = biases is not None
    out_dtype = out_dtype or x2d.dtype

    rm = _row_block(n)
    cn = _col_block(d_out)
    grid = (n // rm, d_out // cn)

    in_specs = [pl.BlockSpec((rm, d_in), lambda i, j: (i, 0)),
                pl.BlockSpec((1, d_in), lambda i, j: (0, 0)),
                pl.BlockSpec((1, d_in), lambda i, j: (0, 0))]
    args = [x2d, g.reshape(1, d_in), b.reshape(1, d_in)]
    for w in weights:
        in_specs.append(pl.BlockSpec((d_in, cn), lambda i, j: (0, j)))
        args.append(w)
    if has_bias:
        for wb in biases:
            in_specs.append(pl.BlockSpec((1, cn), lambda i, j: (0, j)))
            args.append(wb.reshape(1, d_out))

    out_specs = [pl.BlockSpec((rm, cn), lambda i, j: (i, j)) for _ in range(num_out)]
    out_shape = [jax.ShapeDtypeStruct((n, d_out), out_dtype) for _ in range(num_out)]

    outs = pl.pallas_call(
        functools.partial(_ln_matmul_kernel, num_out=num_out,
                          has_bias=has_bias, relu=relu),
        grid=grid,
        in_specs=in_specs,
        out_specs=out_specs,
        out_shape=out_shape,
        compiler_params=pltpu.CompilerParams(
            dimension_semantics=("parallel", "parallel")),
    )(*args)
    return tuple(outs)


def _matmul_residual(x2d, w, bias, res2d):
    n, d_in = x2d.shape
    d_out = w.shape[1]
    rm = _row_block(n)
    cn = _col_block(d_out)
    grid = (n // rm, d_out // cn)
    return pl.pallas_call(
        _matmul_residual_kernel,
        grid=grid,
        in_specs=[pl.BlockSpec((rm, d_in), lambda i, j: (i, 0)),
                  pl.BlockSpec((d_in, cn), lambda i, j: (0, j)),
                  pl.BlockSpec((1, cn), lambda i, j: (0, j)),
                  pl.BlockSpec((rm, cn), lambda i, j: (i, j))],
        out_specs=pl.BlockSpec((rm, cn), lambda i, j: (i, j)),
        out_shape=jax.ShapeDtypeStruct((n, d_out), res2d.dtype),
        compiler_params=pltpu.CompilerParams(
            dimension_semantics=("parallel", "parallel")),
    )(x2d, w, bias.reshape(1, d_out), res2d)


def _rel_attention(q, k, v, u, pe, pb, mask_bst, scale, out_dtype):
    B, S, D = q.shape
    T = k.shape[1]
    H, P, dk = pe.shape
    Bm = mask_bst.shape[0]
    if Bm == B:
        mask_idx = lambda bb: (bb, 0, 0)
    else:                                   # mask shared across batch -> no re-DMA
        mask_idx = lambda bb: (0, 0, 0)

    return pl.pallas_call(
        functools.partial(_rel_attn_kernel, heads=H, dk=dk, scale=scale),
        grid=(B,),
        in_specs=[
            pl.BlockSpec((1, S, D), lambda bb: (bb, 0, 0)),   # q
            pl.BlockSpec((1, T, D), lambda bb: (bb, 0, 0)),   # k
            pl.BlockSpec((1, T, D), lambda bb: (bb, 0, 0)),   # v
            pl.BlockSpec((H, dk), lambda bb: (0, 0)),         # query_pos_bias (u)
            pl.BlockSpec((H, P, dk), lambda bb: (0, 0, 0)),   # key_pos_embeddings
            pl.BlockSpec((H, P), lambda bb: (0, 0)),          # key_pos_bias
            pl.BlockSpec((1, S, T), mask_idx),                # mask
        ],
        out_specs=pl.BlockSpec((1, S, D), lambda bb: (bb, 0, 0)),
        out_shape=jax.ShapeDtypeStruct((B, S, D), out_dtype),
        compiler_params=pltpu.CompilerParams(
            dimension_semantics=("parallel",)),               # megacore on v7x
    )(q, k, v, u, pe, pb, mask_bst)


# --------------------------- TransformerXL layer ----------------------------

def transformer_xl_layer(x, mem, mask, params, *, heads):
    S, B, D = x.shape
    dk = D // heads

    # internal batch-major layout [B, seq, D] so all attention blocks are lane-dense
    xb = jnp.transpose(x, (1, 0, 2))                 # [B, S, D]
    xb2 = xb.reshape(B * S, D)

    if mem is not None and mem.shape[0] > 0:
        M = mem.shape[0]
        memb = jnp.transpose(mem, (1, 0, 2))         # [B, M, D]
        xall = jnp.concatenate([memb, xb], axis=1)   # [B, T, D]
    else:
        M = 0
        xall = xb
    T = M + S
    xall2 = xall.reshape(B * T, D)

    # fused LayerNorm + projections (q/k/v are bias-free in RelativeMultiHeadAttention)
    (q2,) = _ln_matmul(xb2, params["ln_attn_g"], params["ln_attn_b"], [params["wq"]])
    k2, v2 = _ln_matmul(xall2, params["ln_attn_g"], params["ln_attn_b"],
                        [params["wk"], params["wv"]])
    q = q2.reshape(B, S, D)
    k = k2.reshape(B, T, D)
    v = v2.reshape(B, T, D)

    # relative-position tables: slice [P-T : P+S], keep UN-gathered; shift happens in-kernel
    P = T + S
    pe = jnp.transpose(params["key_pos_emb"][P_REL - T:P_REL + S], (1, 0, 2))  # [H, P, dk]
    pb = jnp.transpose(params["key_pos_bias"][P_REL - T:P_REL + S], (1, 0))    # [H, P]
    u = params["q_pos_bias"]                                                   # [H, dk]

    # mask: [S, T, B] or [S, T, 1]  ->  [Bm, S, T]  (NOT broadcast to B)
    mask_bst = jnp.transpose(mask, (2, 0, 1)).astype(jnp.float32)

    scale = 1.0 / math.sqrt(dk)
    ctx = _rel_attention(q, k, v, u, pe, pb, mask_bst, scale, x.dtype)   # [B, S, D]

    # output projection + bias + residual (dropout = identity)
    x1 = _matmul_residual(ctx.reshape(B * S, D), params["wo"], params["bo"], xb2)

    # fused LN_ff + FF1 + ReLU, then FF2 + bias + residual
    (h,) = _ln_matmul(x1, params["ln_ff_g"], params["ln_ff_b"], [params["w_ff1"]],
                      biases=[params["b_ff1"]], relu=True)
    out2 = _matmul_residual(h, params["w_ff2"], params["b_ff2"], x1)

    return jnp.transpose(out2.reshape(B, S, D), (1, 0, 2))   # back to [S, B, D]


# ------------------------------ pure-JAX reference ---------------------------

def _shift_right(t):
    s, j = t.shape[0], t.shape[1]
    zero = jnp.zeros((s, 1) + t.shape[2:], t.dtype)
    tp = jnp.concatenate([t, zero], axis=1)
    tp = tp.reshape((j + 1, s) + t.shape[2:])
    return tp[:-1].reshape(t.shape)


def reference_forward(x, mem, mask, p, *, heads):
    hp = jax.lax.Precision.HIGHEST

    def ln(t, g, b):
        mu = t.mean(-1, keepdims=True)
        var = ((t - mu) ** 2).mean(-1, keepdims=True)
        return (t - mu) / jnp.sqrt(var + 1e-5) * g + b

    S, B, D = x.shape
    dk = D // heads
    z = ln(x, p["ln_attn_g"], p["ln_attn_b"])
    mem_n = ln(mem, p["ln_attn_g"], p["ln_attn_b"])
    m_z = jnp.concatenate([mem_n, z], axis=0)
    T = m_z.shape[0]
    q = jnp.einsum("sbd,de->sbe", z, p["wq"], precision=hp).reshape(S, B, heads, dk)
    k = jnp.einsum("sbd,de->sbe", m_z, p["wk"], precision=hp).reshape(T, B, heads, dk)
    v = jnp.einsum("sbd,de->sbe", m_z, p["wv"], precision=hp).reshape(T, B, heads, dk)
    pos_emb = p["key_pos_emb"][P_REL - T:P_REL + S]
    pos_bias = p["key_pos_bias"][P_REL - T:P_REL + S]
    ac = jnp.einsum("ibhd,jbhd->ijbh", q + p["q_pos_bias"][None, None], k, precision=hp)
    b_ = jnp.einsum("ibhd,jhd->ijbh", q, pos_emb, precision=hp)
    d_ = pos_bias[None, :, None, :]
    bd = _shift_right(b_ + d_)[:, -T:]
    scores = (ac + bd) * (1.0 / math.sqrt(dk))
    scores = jnp.where(mask[:, :, :, None] > 0, scores, -jnp.inf)
    attn = jax.nn.softmax(scores, axis=1)
    o = jnp.einsum("ijbh,jbhd->ibhd", attn, v, precision=hp).reshape(S, B, D)
    o = jnp.einsum("sbd,de->sbe", o, p["wo"], precision=hp) + p["bo"]
    x1 = x + o
    z2 = ln(x1, p["ln_ff_g"], p["ln_ff_b"])
    h = jax.nn.relu(jnp.einsum("sbd,df->sbf", z2, p["w_ff1"], precision=hp) + p["b_ff1"])
    ff = jnp.einsum("sbf,fd->sbd", h, p["w_ff2"], precision=hp) + p["b_ff2"]
    return x1 + ff


# ----------------------------------- main ------------------------------------

if __name__ == "__main__":
    S, M, B, D, H, DFF = 8, 8, 2, 32, 4, 64
    dk = D // H
    keys = jax.random.split(jax.random.PRNGKey(0), 20)

    def rnd(k, shape, scale=0.1):
        return scale * jax.random.normal(k, shape, dtype=jnp.float32)

    params = {
        "ln_attn_g": 1.0 + rnd(keys[0], (D,)),
        "ln_attn_b": rnd(keys[1], (D,)),
        "wq": rnd(keys[2], (D, D)),
        "wk": rnd(keys[3], (D, D)),
        "wv": rnd(keys[4], (D, D)),
        "wo": rnd(keys[5], (D, D)),
        "bo": rnd(keys[6], (D,)),
        "key_pos_emb": rnd(keys[7], (2 * P_REL, H, dk)),
        "key_pos_bias": rnd(keys[8], (2 * P_REL, H)),
        "q_pos_bias": rnd(keys[9], (H, dk)),
        "ln_ff_g": 1.0 + rnd(keys[10], (D,)),
        "ln_ff_b": rnd(keys[11], (D,)),
        "w_ff1": rnd(keys[12], (D, DFF)),
        "b_ff1": rnd(keys[13], (DFF,)),
        "w_ff2": rnd(keys[14], (DFF, D)),
        "b_ff2": rnd(keys[15], (D,)),
    }

    x = rnd(keys[16], (S, B, D), scale=0.5)
    mem = rnd(keys[17], (M, B, D), scale=0.5)

    # causal mask: query i (global pos M+i) can see keys 0..M+i ; shape [S, T, 1]
    T = M + S
    mask = (jnp.arange(T)[None, :] <= (M + jnp.arange(S))[:, None]).astype(jnp.float32)
    mask = mask[:, :, None]

    out = transformer_xl_layer(x, mem, mask, params, heads=H)
    out = jax.block_until_ready(out)
    ref = reference_forward(x, mem, mask, params, heads=H)
    assert out.shape == (S, B, D)
    assert bool(jnp.all(jnp.isfinite(out)))
    max_err = float(jnp.max(jnp.abs(out - ref)))
    if not jnp.allclose(out, ref, atol=2e-2, rtol=2e-2):
        raise AssertionError(f"mismatch vs reference, max abs err = {max_err}")

    # extra check (review concern): validate the in-kernel relative shift with the
    # mask fully open so every (i, j) position is exercised.
    mask_open = jnp.ones((S, T, 1), jnp.float32)
    out2 = jax.block_until_ready(
        transformer_xl_layer(x, mem, mask_open, params, heads=H))
    ref2 = reference_forward(x, mem, mask_open, params, heads=H)
    max_err2 = float(jnp.max(jnp.abs(out2 - ref2)))
    if not jnp.allclose(out2, ref2, atol=2e-2, rtol=2e-2):
        raise AssertionError(f"mismatch (open mask), max abs err = {max_err2}")

    print("KERNEL_OK")
</pallas_src>

<mosaic_0001>
module attributes {stable_mosaic.version = 11 : i64} {
  func.func @_ln_matmul_kernel(%arg0: i32, %arg1: i32, %arg2: memref<16x32xf32, #tpu.memory_space<vmem>>, %arg3: memref<1x32xf32, #tpu.memory_space<vmem>>, %arg4: memref<1x32xf32, #tpu.memory_space<vmem>>, %arg5: memref<32x32xf32, #tpu.memory_space<vmem>>, %arg6: memref<16x32xf32, #tpu.memory_space<vmem>>) attributes {dimension_semantics = [#tpu.dimension_semantics<parallel>, #tpu.dimension_semantics<parallel>], iteration_bounds = array<i64: 1, 1>, scalar_prefetch = 0 : i64, scratch_operands = 0 : i64, tpu.core_type = #tpu.core_type<tc>, window_params = [{transform_indices = @transform_0, window_bounds = array<i64: 16, 32>}, {pipeline_mode = #tpu.pipeline_mode<synchronous>, transform_indices = @transform_1, window_bounds = array<i64: 1, 32>}, {pipeline_mode = #tpu.pipeline_mode<synchronous>, transform_indices = @transform_2, window_bounds = array<i64: 1, 32>}, {transform_indices = @transform_3, window_bounds = array<i64: 32, 32>}, {transform_indices = @transform_4, window_bounds = array<i64: 16, 32>}]} {
    %c0 = arith.constant 0 : index
    %c0_0 = arith.constant 0 : index
    %0 = vector.load %arg2[%c0, %c0_0] : memref<16x32xf32, #tpu.memory_space<vmem>>, vector<16x32xf32>
    %cst = arith.constant dense<0.000000e+00> : vector<16xf32>
    %1 = vector.multi_reduction <add>, %0, %cst [1] : vector<16x32xf32> to vector<16xf32>
    %2 = vector.shape_cast %1 : vector<16xf32> to vector<16x1xf32>
    %cst_1 = arith.constant 3.200000e+01 : f32
    %3 = vector.broadcast %cst_1 : f32 to vector<16x1xf32>
    %4 = arith.divf %2, %3 : vector<16x1xf32>
    %5 = vector.broadcast %4 : vector<16x1xf32> to vector<16x32xf32>
    %6 = arith.subf %0, %5 : vector<16x32xf32>
    %7 = arith.mulf %6, %6 : vector<16x32xf32>
    %cst_2 = arith.constant dense<0.000000e+00> : vector<16xf32>
    %8 = vector.multi_reduction <add>, %7, %cst_2 [1] : vector<16x32xf32> to vector<16xf32>
    %9 = vector.shape_cast %8 : vector<16xf32> to vector<16x1xf32>
    %cst_3 = arith.constant 3.200000e+01 : f32
    %10 = vector.broadcast %cst_3 : f32 to vector<16x1xf32>
    %11 = arith.divf %9, %10 : vector<16x1xf32>
    %cst_4 = arith.constant 9.99999974E-6 : f32
    %12 = vector.broadcast %cst_4 : f32 to vector<16x1xf32>
    %13 = arith.addf %11, %12 : vector<16x1xf32>
    %14 = math.rsqrt %13 : vector<16x1xf32>
    %15 = vector.broadcast %14 : vector<16x1xf32> to vector<16x32xf32>
    %16 = arith.mulf %6, %15 : vector<16x32xf32>
    %c0_5 = arith.constant 0 : index
    %c0_6 = arith.constant 0 : index
    %17 = vector.load %arg3[%c0_5, %c0_6] : memref<1x32xf32, #tpu.memory_space<vmem>>, vector<1x32xf32>
    %18 = vector.broadcast %17 : vector<1x32xf32> to vector<16x32xf32>
    %19 = arith.mulf %16, %18 : vector<16x32xf32>
    %c0_7 = arith.constant 0 : index
    %c0_8 = arith.constant 0 : index
    %20 = vector.load %arg4[%c0_7, %c0_8] : memref<1x32xf32, #tpu.memory_space<vmem>>, vector<1x32xf32>
    %21 = vector.broadcast %20 : vector<1x32xf32> to vector<16x32xf32>
    %22 = arith.addf %19, %21 : vector<16x32xf32>
    %c0_9 = arith.constant 0 : index
    %c0_10 = arith.constant 0 : index
    %23 = vector.load %arg5[%c0_9, %c0_10] : memref<32x32xf32, #tpu.memory_space<vmem>>, vector<32x32xf32>
    %cst_11 = arith.constant dense<0.000000e+00> : vector<16x32xf32>
    %24 = tpu.matmul %22, %23, %cst_11 {dimension_numbers = #tpu.dot_dimension_numbers<[1], [0], [0], [1], [0, 0, 1, 1], [], []>} : vector<16x32xf32>, vector<32x32xf32>, vector<16x32xf32> -> vector<16x32xf32>
    %c0_12 = arith.constant 0 : index
    %c0_13 = arith.constant 0 : index
    %25 = vector.load %arg6[%c0_12, %c0_13] : memref<16x32xf32, #tpu.memory_space<vmem>>, vector<16x32xf32>
    tpu.vector_store %arg6[%c0_12, %c0_13], %24 {strides = array<i32>} : memref<16x32xf32, #tpu.memory_space<vmem>>, vector<16x32xf32>,
    return
  }
  func.func @transform_0(%arg0: i32, %arg1: i32) -> (i32, i32) {
    %c0_i32 = arith.constant 0 : i32
    %c0_i32_0 = arith.constant 0 : i32
    return %arg0, %c0_i32 : i32, i32
  }
  func.func @transform_1(%arg0: i32, %arg1: i32) -> (i32, i32) {
    %c0_i32 = arith.constant 0 : i32
    %c0_i32_0 = arith.constant 0 : i32
    %c0_i32_1 = arith.constant 0 : i32
    return %c0_i32, %c0_i32_0 : i32, i32
  }
  func.func @transform_2(%arg0: i32, %arg1: i32) -> (i32, i32) {
    %c0_i32 = arith.constant 0 : i32
    %c0_i32_0 = arith.constant 0 : i32
    %c0_i32_1 = arith.constant 0 : i32
    return %c0_i32, %c0_i32_0 : i32, i32
  }
  func.func @transform_3(%arg0: i32, %arg1: i32) -> (i32, i32) {
    %c0_i32 = arith.constant 0 : i32
    %c0_i32_0 = arith.constant 0 : i32
    return %c0_i32, %arg1 : i32, i32
  }
  func.func @transform_4(%arg0: i32, %arg1: i32) -> (i32, i32) {
    %c0_i32 = arith.constant 0 : i32
    return %arg0, %arg1 : i32, i32
  }
}

</mosaic_0001>

<llo_original>
// kernel: tpu_custom_call.1
$region0: #{tpu_custom_call.1}
  #allocation0 [shape = 'u32[]', space=smem, size = 0x4, offset = 0x4, fixed_abs, tag = 'smem constant byte address 0x4 - core index']
  #allocation1 [shape = 'u32[144,128]{1,0:T(1,128)}', space=vmem, size = 0x12000, scoped, tag = 'internal scratch']
  %s0 = inlined_call_operand.hbm [shape: f32[16,32], index: 0, kind: input, shape index: {}]
  %s1 = inlined_call_operand.vmem [shape: f32[1,32], index: 1, kind: input, shape index: {}]
  %s2 = inlined_call_operand.vmem [shape: f32[1,32], index: 2, kind: input, shape index: {}]
  %s3 = inlined_call_operand.hbm [shape: f32[32,32], index: 3, kind: input, shape index: {}]
  %s4 = inlined_call_operand.hbm [shape: f32[16,32], index: 4, kind: output, shape index: {}]
  %s5 = sld [smem:[#allocation0]]
  $region34: #{tpu_custom_call.1} parent=0
    _
  %s7 = ssub.s32 1, %s5
  %s8 = scalar_select 0, %s7, %s5
  $region1: #{tpu_custom_call.1} parent=0
    #allocation2 [shape = 'u8[8192]{0}', space=vmem, size = 0x2000, scoped, tag = 'input window, operand 0, single buffered']
    #allocation3 [shape = 's32[1]{0}', space=sflag, size = 0x4, scoped, tag = 'scoped memory for tpu_custom_call.1']
    #allocation4 [shape = 's32[1]{0}', space=sflag, size = 0x4, scoped, tag = 'scoped memory for tpu_custom_call.1']
    #allocation5 [shape = 'u8[16384]{0}', space=vmem, size = 0x4000, scoped, tag = 'input window, operand 3, single buffered']
    #allocation6 [shape = 's32[1]{0}', space=sflag, size = 0x4, scoped, tag = 'scoped memory for tpu_custom_call.1']
    #allocation7 [shape = 'u8[8192]{0}', space=vmem, size = 0x2000, scoped, tag = 'output window, operand 0, single buffered']
    %9 = vsyncpa [#allocation3], 0
    %10 = vsyncpa [#allocation6], 0
    %11 = vsyncpa [#allocation4], 0
    // Predicated region
    $region2: #{tpu_custom_call.1} parent=1 // pred_check
      _
    $region3: #{tpu_custom_call.1} parent=1 // pred_check_branch
      %13 = sbr.rel (0) target = $region5
    $region4: #{tpu_custom_call.1} parent=1 // pred_region
      %s15 = ssub.s32 256, 256
      %16 = vsyncadd [#allocation3], %s15
      %s17 = sshll.u32 [#allocation2], 4
      %s18 = int_to_ptr.vmem [resolvable:$true] %s17
      %23 = dma.hbm_to_vmem [thread:$0]  %s0, 256, %s18, [#allocation3], 128, 128, 8
    $region5: #{tpu_custom_call.1} parent=1 // pred_fallthru
      _
    // Predicated region
    $region6: #{tpu_custom_call.1} parent=1 // pred_check
      _
    $region7: #{tpu_custom_call.1} parent=1 // pred_check_branch
      %25 = sbr.rel (0) target = $region9
    $region8: #{tpu_custom_call.1} parent=1 // pred_region
      _
    $region9: #{tpu_custom_call.1} parent=1 // pred_fallthru
      _
    // Predicated region
    $region10: #{tpu_custom_call.1} parent=1 // pred_check
      _
    $region11: #{tpu_custom_call.1} parent=1 // pred_check_branch
      %27 = sbr.rel (0) target = $region13
    $region12: #{tpu_custom_call.1} parent=1 // pred_region
      _
    $region13: #{tpu_custom_call.1} parent=1 // pred_fallthru
      _
    // Predicated region
    $region14: #{tpu_custom_call.1} parent=1 // pred_check
      _
    $region15: #{tpu_custom_call.1} parent=1 // pred_check_branch
      %29 = sbr.rel (0) target = $region17
    $region16: #{tpu_custom_call.1} parent=1 // pred_region
      %s31 = ssub.s32 512, 512
      %32 = vsyncadd [#allocation6], %s31
      %s33 = sshll.u32 [#allocation5], 4
      %s34 = int_to_ptr.vmem [resolvable:$true] %s33
      %39 = dma.hbm_to_vmem [thread:$0]  %s3, 512, %s34, [#allocation6], 128, 128, 8
    $region17: #{tpu_custom_call.1} parent=1 // pred_fallthru
      _
    // Predicated region
    $region18: #{tpu_custom_call.1} parent=1 // pred_check
      _
    $region19: #{tpu_custom_call.1} parent=1 // pred_check_branch
      %41 = sbr.rel (0) target = $region21
    $region20: #{tpu_custom_call.1} parent=1 // pred_region
      %42 = dma.done [#allocation3], 256
    $region21: #{tpu_custom_call.1} parent=1 // pred_fallthru
      _
    // Predicated region
    $region22: #{tpu_custom_call.1} parent=1 // pred_check
      _
    $region23: #{tpu_custom_call.1} parent=1 // pred_check_branch
      %44 = sbr.rel (0) target = $region25
    $region24: #{tpu_custom_call.1} parent=1 // pred_region
      %45 = dma.done [#allocation6], 512
    $region25: #{tpu_custom_call.1} parent=1 // pred_fallthru
      _
    %v46 = vld [vmem:[#allocation2] sm:$0xff]
    %v47 = vld [vmem:[#allocation2 + $0x8] sm:$0xff]
    %vm48 = vcmask 261120
    %v49 = vsel %vm48, %v46, 0.0
    %50 = vadd.xlane.f32.xlu0 %v49
    %v51 = vpop.xlane.xlu0 %50
    %v52 = vsel %vm48, %v47, 0.0
    %53 = vadd.xlane.f32.xlu0 %v52
    %v54 = vpop.xlane.xlu0 %53
    %v55 = vrcp.pop 32.0
    %v56 = vmul.f32 %v51, %v55
    %v57 = vmul.f32 %v54, %v55
    %v58 = vsub.f32 %v46, %v56
    %v59 = vsub.f32 %v47, %v57
    %v60 = vmul.f32 %v58, %v58
    %v61 = vmul.f32 %v59, %v59
    %v62 = vsel %vm48, %v60, 0.0
    %63 = vadd.xlane.f32.xlu0 %v62
    %v64 = vpop.xlane.xlu0 %63
    %v65 = vsel %vm48, %v61, 0.0
    %66 = vadd.xlane.f32.xlu0 %v65
    %v67 = vpop.xlane.xlu0 %66
    %v68 = vmul.f32 %v64, %v55
    %v69 = vmul.f32 %v67, %v55
    %v70 = vadd.f32 %v68, 1e-05
    %v71 = vadd.f32 %v69, 1e-05
    %v72 = vrsqrt.pop %v70
    %v73 = vrsqrt.pop %v71
    %v74 = vmul.f32 %v58, %v72
    %v75 = vmul.f32 %v59, %v73
    %v76 = vld [vmem:[%s1] sm:$0x1]
    %v78 = vlaneseq
    %v79 = vshrl.u32 %v78, 7
    %v80 = vsub.s32 0, %v79
    %v81 = vrot.slane %v76, %v80
    %v83 = vmul.f32 %v74, %v81
    %v84 = vmul.f32 %v75, %v81
    %v85 = vld [vmem:[%s2] sm:$0x1]
    %v87 = vlaneseq
    %v88 = vshrl.u32 %v87, 7
    %v89 = vsub.s32 0, %v88
    %v90 = vrot.slane %v85, %v89
    %v92 = vadd.f32 %v83, %v90
    %v93 = vadd.f32 %v84, %v90
    %v94 = vld [vmem:[#allocation5] sm:$0xff]
    %v95 = vld [vmem:[#allocation5 + $0x8] sm:$0xff]
    %v96 = vld [vmem:[#allocation5 + $0x10] sm:$0xff]
    %v97 = vld [vmem:[#allocation5 + $0x18] sm:$0xff]
    %v99 = vsel %vm48, %v92, 0
    %v102 = vsel %vm48, %v93, 0
    %104 = vmatprep.subr.mxu0 0.0
    %105 = vmatpush1.msra.mxu0 %v94
    %106 = vmatprep.subr.mxu0 0.0
    %107 = vmatpush1.msra.mxu0 %v95
    %108 = vmatprep.subr.mxu0 0.0
    %109 = vmatpush1.msra.mxu0 %v96
    %110 = vmatprep.subr.mxu0 0.0
    %111 = vmatpush1.msra.mxu0 %v97
    %112 = vmatprep.subr.mxu0 0.0
    %113 = vmatpush1.msra.mxu0 0.0
    %114 = vmatprep.subr.mxu0 0.0
    %115 = vmatpush1.msra.mxu0 0.0
    %116 = vmatprep.subr.mxu0 0.0
    %117 = vmatpush1.msra.mxu0 0.0
    %118 = vmatprep.subr.mxu0 0.0
    %119 = vmatpush1.msra.mxu0 0.0
    %120 = vmatprep.subr.mxu0 0.0
    %121 = vmatpush1.msra.mxu0 0.0
    %122 = vmatprep.subr.mxu0 0.0
    %123 = vmatpush1.msra.mxu0 0.0
    %124 = vmatprep.subr.mxu0 0.0
    %125 = vmatpush1.msra.mxu0 0.0
    %126 = vmatprep.subr.mxu0 0.0
    %127 = vmatpush1.msra.mxu0 0.0
    %128 = vmatprep.subr.mxu0 0.0
    %129 = vmatpush1.msra.mxu0 0.0
    %130 = vmatprep.subr.mxu0 0.0
    %131 = vmatpush1.msra.mxu0 0.0
    %132 = vmatprep.subr.mxu0 0.0
    %133 = vmatpush1.msra.mxu0 0.0
    %134 = vmatprep.subr.mxu0 0.0
    %135 = vmatpush1.msra.mxu0 0.0
    %136 = vmatprep.subr.mxu0 0.0
    %137 = vmatpush1.msra.mxu0 0.0
    %138 = vmatprep.subr.mxu0 0.0
    %139 = vmatpush1.msra.mxu0 0.0
    %140 = vmatprep.subr.mxu0 0.0
    %141 = vmatpush1.msra.mxu0 0.0
    %142 = vmatprep.subr.mxu0 0.0
    %143 = vmatpush1.msra.mxu0 0.0
    %144 = vmatprep.subr.mxu0 0.0
    %145 = vmatpush1.msra.mxu0 0.0
    %146 = vmatprep.subr.mxu0 0.0
    %147 = vmatpush1.msra.mxu0 0.0
    %148 = vmatprep.subr.mxu0 0.0
    %149 = vmatpush1.msra.mxu0 0.0
    %150 = vmatprep.subr.mxu0 0.0
    %151 = vmatpush1.msra.mxu0 0.0
    %152 = vmatprep.subr.mxu0 0.0
    %153 = vmatpush1.msra.mxu0 0.0
    %154 = vmatprep.subr.mxu0 0.0
    %155 = vmatpush1.msra.mxu0 0.0
    %156 = vmatprep.subr.mxu0 0.0
    %157 = vmatpush1.msra.mxu0 0.0
    %158 = vmatprep.subr.mxu0 0.0
    %159 = vmatpush1.msra.mxu0 0.0
    %160 = vmatprep.subr.mxu0 0.0
    %161 = vmatpush1.msra.mxu0 0.0
    %162 = vmatprep.subr.mxu0 0.0
    %163 = vmatpush1.msra.mxu0 0.0
    %164 = vmatprep.subr.mxu0 0.0
    %165 = vmatpush1.msra.mxu0 0.0
    %166 = vmatprep.subr.mxu0 0.0
    %167 = vmatpush1.msra.mxu0 0.0
    %168 = vmatprep.mubr.f32.mxu0 0.0
    %169 = vmatmul.mubr.f32.gmra.mrb[0].mxu0 %v99
    %v170 = vpop.f32.mrb[0].mxu0
    %v171 = vadd.f32 0.0, %v170
    %v172 = vpop.f32.mrb[0].mxu0
    %173 = vmatprep.mubr.f32.mxu0 0.0
    %174 = vmatmul.mubr.f32.gmra.mrb[0].mxu0 %v102
    %v175 = vpop.f32.mrb[0].mxu0
    %v176 = vadd.f32 0.0, %v175
    %v177 = vpop.f32.mrb[0].mxu0
    %178 = vdwg.mxu0
    %179 = vst.msk [vmem:[#allocation7] sm:$0xff] %vm48, %v171
    %180 = vst.msk [vmem:[#allocation7 + $0x8] sm:$0xff] %vm48, %v176
    // Predicated region
    $region26: #{tpu_custom_call.1} parent=1 // pred_check
      _
    $region27: #{tpu_custom_call.1} parent=1 // pred_check_branch
      %182 = sbr.rel (0) target = $region29
    $region28: #{tpu_custom_call.1} parent=1 // pred_region
      %s184 = ssub.s32 256, 256
      %185 = vsyncadd [#allocation4], %s184
      %s186 = sshll.u32 [#allocation7], 4
      %s187 = int_to_ptr.vmem [resolvable:$true] %s186
      %192 = dma.vmem_to_hbm [thread:$0]  %s187, 256, %s4, [#allocation4], 128, 128, 8
    $region29: #{tpu_custom_call.1} parent=1 // pred_fallthru
      _
    // Predicated region
    $region30: #{tpu_custom_call.1} parent=1 // pred_check
      _
    $region31: #{tpu_custom_call.1} parent=1 // pred_check_branch
      %194 = sbr.rel (0) target = $region33
    $region32: #{tpu_custom_call.1} parent=1 // pred_region
      %195 = dma.done [#allocation4], 256
    $region33: #{tpu_custom_call.1} parent=1 // pred_fallthru
      _
    %196 = vsyncpa [#allocation3], 1
    %197 = vsyncpa [#allocation6], 1
    %198 = vsyncpa [#allocation4], 1

</llo_original>
